<compile_context>
chip_gen: v5e
topology: v5e:2x2
jax: 0.10.0
libtpu: 0.0.40
codegen_flags: <defaults>
</compile_context>

<pallas_src>
import functools
from math import sqrt

import jax
import jax.numpy as jnp
import numpy as np
from jax import lax
from jax.experimental import pallas as pl
from jax.experimental.pallas import tpu as pltpu


# nn.Linear "x @ W^T": contract the LAST dims of both operands (no materialized W.T).
_DN_LAST_LAST = (((1,), (1,)), ((), ()))
# Standard (M, K) . (K, N) contraction.
_DN_LAST_FIRST = (((1,), (0,)), ((), ()))


# ----------------------------------------------------------------------------- #
# Kernels
# ----------------------------------------------------------------------------- #
def _prep_kernel(src_ref, val_ref, kw_ref, kb_ref, vw_ref, vb_ref, ow_ref,
                 k_out_ref, w_out_ref, *, n_heads, d_keys, scale):
    """Batch-independent precompute (run once per forward).

    k_out[h] = scale * (src @ Wk^T + bk)[:, hE:(h+1)E]          (H, S, E)
    w_out[h] = (val @ Wv^T + bv)[:, hE:(h+1)E] @ Wo_h^T          (H, S, Dpad)
    """
    src = src_ref[...]
    val = val_ref[...]

    k = lax.dot_general(src, kw_ref[...], _DN_LAST_LAST,
                        preferred_element_type=jnp.float32)
    k = (k + kb_ref[...]) * scale                    # fold 1/sqrt(E) once into K
    v = lax.dot_general(val, vw_ref[...], _DN_LAST_LAST,
                        preferred_element_type=jnp.float32)
    v = v + vb_ref[...]

    ow = ow_ref[...]                                  # (Dpad, H*E), zero-padded rows
    for h in range(n_heads):
        lo = h * d_keys
        hi = lo + d_keys
        k_out_ref[h] = k[:, lo:hi].astype(k_out_ref.dtype)
        w_h = lax.dot_general(v[:, lo:hi].astype(ow.dtype), ow[:, lo:hi],
                              _DN_LAST_LAST, preferred_element_type=jnp.float32)
        w_out_ref[h] = w_h.astype(w_out_ref.dtype)    # (S, Dpad), lane-dense


def _attention_kernel(tgt_ref, qw_ref, qb_ref, k_ref, w_ref, ob_ref, o_ref,
                      *, n_heads, d_keys):
    """Per-batch-tile: Q projection, per-head softmax(QK^T), y += (P @ W_h) / denom."""
    tb, seq_l, d_model = tgt_ref.shape
    m_rows = tb * seq_l
    d_out_pad = w_ref.shape[-1]

    x = tgt_ref[...].reshape(m_rows, d_model)
    q = lax.dot_general(x, qw_ref[...], _DN_LAST_LAST,
                        preferred_element_type=jnp.float32) + qb_ref[...]   # (M, H*E) f32

    y = jnp.zeros((m_rows, d_out_pad), dtype=jnp.float32)
    for h in range(n_heads):                          # static unrolled head loop
        lo = h * d_keys
        hi = lo + d_keys
        qh = q[:, lo:hi].astype(k_ref.dtype)          # (M, E)
        s = lax.dot_general(qh, k_ref[h], _DN_LAST_LAST,
                            preferred_element_type=jnp.float32)             # (M, S)

        # Numerically-stable softmax with DEFERRED normalization.
        m = jnp.max(s, axis=-1, keepdims=True)
        p = jnp.exp(s - m)                            # unnormalized probs, f32
        denom = jnp.sum(p, axis=-1, keepdims=True)
        inv = pl.reciprocal(denom, approx=True)       # EUP slot (~free)
        inv = inv * (2.0 - denom * inv)               # one Newton step -> f32 accuracy

        # Re-associated output path:  y += (P @ (V_h @ Wo_h^T)) * (1/denom)
        # contraction K = S (deep), output N = Dpad (128) lane-dense.
        yh = lax.dot_general(p.astype(w_ref.dtype), w_ref[h], _DN_LAST_FIRST,
                             preferred_element_type=jnp.float32)            # (M, Dpad)
        y = y + yh * inv

    y = y + ob_ref[...]
    o_ref[...] = y.reshape(tb, seq_l, d_out_pad).astype(o_ref.dtype)


# ----------------------------------------------------------------------------- #
# Wrapper
# ----------------------------------------------------------------------------- #
def _pick_batch_tile(batch, seq_l, target_rows=256):
    """Largest divisor of B with TB*L <= target_rows, keeping >= 2 grid steps
    when possible so both v7x TensorCores get work."""
    divisors = [d for d in range(1, batch + 1) if batch % d == 0]
    cands = [d for d in divisors if d * seq_l <= target_rows] or [1]
    tb = max(cands)
    if tb == batch and batch > 1:
        smaller = [d for d in cands if d < batch]
        if smaller:
            tb = max(smaller)
    return tb


def _nbytes(shape, dtype):
    return int(np.prod(shape)) * jnp.dtype(dtype).itemsize


def _vmem_limit(block_bytes):
    # double-buffered blocks + headroom, kept within every TPU gen's physical VMEM.
    return int(min(64 * 1024 * 1024, max(32 * 1024 * 1024, 2 * block_bytes + (4 << 20))))


def reprogramming_layer_forward(params, target_embedding, source_embedding,
                                value_embedding, n_heads,
                                compute_dtype=jnp.float32):
    """Fused ReprogrammingLayer forward.  Returns (B, L, 64)."""
    B, L, d_model = target_embedding.shape
    S, d_llm = source_embedding.shape
    dk_total = params["q_w"].shape[0]                 # H * E
    d_keys = dk_total // n_heads
    d_out = params["o_w"].shape[0]
    d_out_pad = max(128, ((d_out + 127) // 128) * 128)   # lane-dense output width
    scale = 1.0 / sqrt(d_keys)
    out_dtype = target_embedding.dtype
    cd = jnp.dtype(compute_dtype)

    # One-time HBM-side dtype conversion of the big operands (no in-kernel casts).
    tgt = target_embedding.astype(cd)
    src = source_embedding.astype(cd)
    val = value_embedding.astype(cd)
    qw = params["q_w"].astype(cd)
    kw = params["k_w"].astype(cd)
    vw = params["v_w"].astype(cd)
    ow = jnp.pad(params["o_w"], ((0, d_out_pad - d_out), (0, 0))).astype(cd)
    qb = params["q_b"].reshape(1, dk_total).astype(jnp.float32)
    kb = params["k_b"].reshape(1, dk_total).astype(jnp.float32)
    vb = params["v_b"].reshape(1, dk_total).astype(jnp.float32)
    ob = jnp.pad(params["o_b"], (0, d_out_pad - d_out)).reshape(1, d_out_pad).astype(jnp.float32)

    # ---- Stage 1: batch-independent K (head-major) and W_h = V_h @ Wo_h^T ------- #
    prep_kernel = functools.partial(_prep_kernel, n_heads=n_heads, d_keys=d_keys,
                                    scale=scale)
    prep_block_bytes = (2 * _nbytes((S, d_llm), cd)
                        + 2 * _nbytes((dk_total, d_llm), cd)
                        + _nbytes((d_out_pad, dk_total), cd)
                        + 2 * _nbytes((1, dk_total), jnp.float32)
                        + _nbytes((n_heads, S, d_keys), cd)
                        + _nbytes((n_heads, S, d_out_pad), cd))
    prep_cost = pl.CostEstimate(
        flops=int(4 * S * d_llm * dk_total + 2 * S * dk_total * d_out_pad),
        transcendentals=0,
        bytes_accessed=int(prep_block_bytes))
    # TODO(synk): for realistic S (thousands) / d_llm (>=768), tile the S axis here
    # (extra grid dim) and single-buffer constant blocks instead of whole-array residency.
    k_head, w_head = pl.pallas_call(
        prep_kernel,
        out_shape=(jax.ShapeDtypeStruct((n_heads, S, d_keys), cd),
                   jax.ShapeDtypeStruct((n_heads, S, d_out_pad), cd)),
        grid=(1,),
        in_specs=[
            pl.BlockSpec((S, d_llm), lambda i: (0, 0)),             # source
            pl.BlockSpec((S, d_llm), lambda i: (0, 0)),             # value
            pl.BlockSpec((dk_total, d_llm), lambda i: (0, 0)),      # k_w
            pl.BlockSpec((1, dk_total), lambda i: (0, 0)),          # k_b
            pl.BlockSpec((dk_total, d_llm), lambda i: (0, 0)),      # v_w
            pl.BlockSpec((1, dk_total), lambda i: (0, 0)),          # v_b
            pl.BlockSpec((d_out_pad, dk_total), lambda i: (0, 0)),  # o_w (row-padded)
        ],
        out_specs=(pl.BlockSpec((n_heads, S, d_keys), lambda i: (0, 0, 0)),
                   pl.BlockSpec((n_heads, S, d_out_pad), lambda i: (0, 0, 0))),
        compiler_params=pltpu.CompilerParams(
            dimension_semantics=("arbitrary",),
            vmem_limit_bytes=_vmem_limit(prep_block_bytes)),
        cost_estimate=prep_cost,
    )(src, val, kw, kb, vw, vb, ow)

    # ---- Stage 2: per-batch-tile attention + (re-associated) output projection -- #
    tb = _pick_batch_tile(B, L)
    grid = (B // tb,)
    attn_kernel = functools.partial(_attention_kernel, n_heads=n_heads, d_keys=d_keys)
    attn_block_bytes = (_nbytes((tb, L, d_model), cd)
                        + _nbytes((dk_total, d_model), cd)
                        + _nbytes((1, dk_total), jnp.float32)
                        + _nbytes((n_heads, S, d_keys), cd)
                        + _nbytes((n_heads, S, d_out_pad), cd)
                        + _nbytes((1, d_out_pad), jnp.float32)
                        + _nbytes((tb, L, d_out_pad), out_dtype))
    attn_cost = pl.CostEstimate(
        flops=int(2 * B * L * d_model * dk_total
                  + 2 * B * L * S * dk_total
                  + 2 * B * L * S * n_heads * d_out_pad),
        transcendentals=int(B * L * S * n_heads),
        bytes_accessed=int(_nbytes((B, L, d_model), cd)
                           + _nbytes((dk_total, d_model), cd)
                           + _nbytes((1, dk_total), jnp.float32)
                           + _nbytes((n_heads, S, d_keys), cd)
                           + _nbytes((n_heads, S, d_out_pad), cd)
                           + _nbytes((1, d_out_pad), jnp.float32)
                           + _nbytes((B, L, d_out_pad), out_dtype)))
    out_pad = pl.pallas_call(
        attn_kernel,
        out_shape=jax.ShapeDtypeStruct((B, L, d_out_pad), out_dtype),
        grid=grid,
        in_specs=[
            pl.BlockSpec((tb, L, d_model), lambda b: (b, 0, 0)),        # target tile
            pl.BlockSpec((dk_total, d_model), lambda b: (0, 0)),        # q_w (resident)
            pl.BlockSpec((1, dk_total), lambda b: (0, 0)),              # q_b
            pl.BlockSpec((n_heads, S, d_keys), lambda b: (0, 0, 0)),    # K   (resident)
            pl.BlockSpec((n_heads, S, d_out_pad), lambda b: (0, 0, 0)), # W_h (resident)
            pl.BlockSpec((1, d_out_pad), lambda b: (0, 0)),             # o_b (padded)
        ],
        out_specs=pl.BlockSpec((tb, L, d_out_pad), lambda b: (b, 0, 0)),
        compiler_params=pltpu.CompilerParams(
            dimension_semantics=("parallel",),
            vmem_limit_bytes=_vmem_limit(attn_block_bytes)),
        cost_estimate=attn_cost,
    )(tgt, qw, qb, k_head, w_head, ob)

    return out_pad[..., :d_out]


# ----------------------------------------------------------------------------- #
# Params + pure-JAX reference for validation
# ----------------------------------------------------------------------------- #
def make_params(key, d_model, n_heads, d_keys, d_llm, d_out=64, dtype=jnp.float32):
    dk = d_keys * n_heads
    ks = jax.random.split(key, 8)
    init = lambda k, shape: (0.02 * jax.random.normal(k, shape)).astype(dtype)
    return {
        "q_w": init(ks[0], (dk, d_model)), "q_b": init(ks[1], (dk,)),
        "k_w": init(ks[2], (dk, d_llm)),   "k_b": init(ks[3], (dk,)),
        "v_w": init(ks[4], (dk, d_llm)),   "v_b": init(ks[5], (dk,)),
        "o_w": init(ks[6], (d_out, dk)),   "o_b": init(ks[7], (d_out,)),
    }


def reference_forward(params, target_embedding, source_embedding, value_embedding,
                      n_heads):
    B, L, _ = target_embedding.shape
    S, _ = source_embedding.shape
    H = n_heads

    q = target_embedding @ params["q_w"].T + params["q_b"]
    k = source_embedding @ params["k_w"].T + params["k_b"]
    v = value_embedding @ params["v_w"].T + params["v_b"]

    E = q.shape[-1] // H
    q = q.reshape(B, L, H, E)
    k = k.reshape(S, H, E)
    v = v.reshape(S, H, E)

    scale = 1.0 / sqrt(E)
    scores = jnp.einsum("blhe,she->bhls", q, k)
    A = jax.nn.softmax(scale * scores, axis=-1)
    out = jnp.einsum("bhls,she->blhe", A, v).reshape(B, L, -1)
    return (out @ params["o_w"].T + params["o_b"]).reshape(B, L, -1)


# ----------------------------------------------------------------------------- #
if __name__ == "__main__":
    # Small shapes consistent with the module's forward
    B, L, S = 2, 8, 16
    d_model, n_heads, d_llm = 32, 4, 64        # d_keys = d_model // n_heads = 8

    key = jax.random.PRNGKey(0)
    k_params, k_tgt, k_src, k_val = jax.random.split(key, 4)

    params = make_params(k_params, d_model, n_heads, d_model // n_heads, d_llm)
    target_embedding = jax.random.normal(k_tgt, (B, L, d_model), dtype=jnp.float32)
    source_embedding = jax.random.normal(k_src, (S, d_llm), dtype=jnp.float32)
    value_embedding = jax.random.normal(k_val, (S, d_llm), dtype=jnp.float32)

    ref = reference_forward(params, target_embedding, source_embedding,
                            value_embedding, n_heads)

    # f32 path: tight correctness check against the pure-JAX reference.
    out = reprogramming_layer_forward(params, target_embedding, source_embedding,
                                      value_embedding, n_heads)
    out = jax.block_until_ready(out)
    assert out.shape == (B, L, 64)
    np.testing.assert_allclose(np.asarray(out), np.asarray(ref), rtol=1e-4, atol=1e-4)

    # bf16 MXU-feed path: now tolerance-checked against the f32 reference.
    out_bf16 = reprogramming_layer_forward(params, target_embedding, source_embedding,
                                           value_embedding, n_heads,
                                           compute_dtype=jnp.bfloat16)
    out_bf16 = jax.block_until_ready(out_bf16)
    assert out_bf16.shape == (B, L, 64)
    np.testing.assert_allclose(np.asarray(out_bf16, dtype=np.float32),
                               np.asarray(ref), rtol=5e-2, atol=1e-2)

    print("KERNEL_OK")
</pallas_src>

<mosaic_0001>
module attributes {stable_mosaic.version = 11 : i64} {
  func.func @_prep_kernel(%arg0: i32, %arg1: memref<16x64xf32, #tpu.memory_space<vmem>>, %arg2: memref<16x64xf32, #tpu.memory_space<vmem>>, %arg3: memref<32x64xf32, #tpu.memory_space<vmem>>, %arg4: memref<1x32xf32, #tpu.memory_space<vmem>>, %arg5: memref<32x64xf32, #tpu.memory_space<vmem>>, %arg6: memref<1x32xf32, #tpu.memory_space<vmem>>, %arg7: memref<128x32xf32, #tpu.memory_space<vmem>>, %arg8: memref<4x16x8xf32, #tpu.memory_space<vmem>>, %arg9: memref<4x16x128xf32, #tpu.memory_space<vmem>>) attributes {dimension_semantics = [#tpu.dimension_semantics<arbitrary>], iteration_bounds = array<i64: 1>, scalar_prefetch = 0 : i64, scratch_operands = 0 : i64, tpu.core_type = #tpu.core_type<tc>, window_params = [{pipeline_mode = #tpu.pipeline_mode<synchronous>, transform_indices = @transform_0, window_bounds = array<i64: 16, 64>}, {pipeline_mode = #tpu.pipeline_mode<synchronous>, transform_indices = @transform_1, window_bounds = array<i64: 16, 64>}, {pipeline_mode = #tpu.pipeline_mode<synchronous>, transform_indices = @transform_2, window_bounds = array<i64: 32, 64>}, {pipeline_mode = #tpu.pipeline_mode<synchronous>, transform_indices = @transform_3, window_bounds = array<i64: 1, 32>}, {pipeline_mode = #tpu.pipeline_mode<synchronous>, transform_indices = @transform_4, window_bounds = array<i64: 32, 64>}, {pipeline_mode = #tpu.pipeline_mode<synchronous>, transform_indices = @transform_5, window_bounds = array<i64: 1, 32>}, {pipeline_mode = #tpu.pipeline_mode<synchronous>, transform_indices = @transform_6, window_bounds = array<i64: 128, 32>}, {pipeline_mode = #tpu.pipeline_mode<synchronous>, transform_indices = @transform_7, window_bounds = array<i64: 4, 16, 8>}, {pipeline_mode = #tpu.pipeline_mode<synchronous>, transform_indices = @transform_8, window_bounds = array<i64: 4, 16, 128>}]} {
    %c0 = arith.constant 0 : index
    %c0_0 = arith.constant 0 : index
    %0 = vector.load %arg1[%c0, %c0_0] : memref<16x64xf32, #tpu.memory_space<vmem>>, vector<16x64xf32>
    %c0_1 = arith.constant 0 : index
    %c0_2 = arith.constant 0 : index
    %1 = vector.load %arg2[%c0_1, %c0_2] : memref<16x64xf32, #tpu.memory_space<vmem>>, vector<16x64xf32>
    %c0_3 = arith.constant 0 : index
    %c0_4 = arith.constant 0 : index
    %2 = vector.load %arg3[%c0_3, %c0_4] : memref<32x64xf32, #tpu.memory_space<vmem>>, vector<32x64xf32>
    %cst = arith.constant dense<0.000000e+00> : vector<16x32xf32>
    %3 = tpu.matmul %0, %2, %cst {dimension_numbers = #tpu.dot_dimension_numbers<[1], [1], [0], [0], [0, 0, 1, 0], [], []>} : vector<16x64xf32>, vector<32x64xf32>, vector<16x32xf32> -> vector<16x32xf32>
    %c0_5 = arith.constant 0 : index
    %c0_6 = arith.constant 0 : index
    %4 = vector.load %arg4[%c0_5, %c0_6] : memref<1x32xf32, #tpu.memory_space<vmem>>, vector<1x32xf32>
    %5 = vector.broadcast %4 : vector<1x32xf32> to vector<16x32xf32>
    %6 = arith.addf %3, %5 : vector<16x32xf32>
    %cst_7 = arith.constant 0.353553385 : f32
    %7 = vector.broadcast %cst_7 : f32 to vector<16x32xf32>
    %8 = arith.mulf %6, %7 : vector<16x32xf32>
    %c0_8 = arith.constant 0 : index
    %c0_9 = arith.constant 0 : index
    %9 = vector.load %arg5[%c0_8, %c0_9] : memref<32x64xf32, #tpu.memory_space<vmem>>, vector<32x64xf32>
    %cst_10 = arith.constant dense<0.000000e+00> : vector<16x32xf32>
    %10 = tpu.matmul %1, %9, %cst_10 {dimension_numbers = #tpu.dot_dimension_numbers<[1], [1], [0], [0], [0, 0, 1, 0], [], []>} : vector<16x64xf32>, vector<32x64xf32>, vector<16x32xf32> -> vector<16x32xf32>
    %c0_11 = arith.constant 0 : index
    %c0_12 = arith.constant 0 : index
    %11 = vector.load %arg6[%c0_11, %c0_12] : memref<1x32xf32, #tpu.memory_space<vmem>>, vector<1x32xf32>
    %12 = vector.broadcast %11 : vector<1x32xf32> to vector<16x32xf32>
    %13 = arith.addf %10, %12 : vector<16x32xf32>
    %c0_13 = arith.constant 0 : index
    %c0_14 = arith.constant 0 : index
    %14 = vector.load %arg7[%c0_13, %c0_14] : memref<128x32xf32, #tpu.memory_space<vmem>>, vector<128x32xf32>
    %15 = vector.extract_strided_slice %8 {offsets = [0, 0], sizes = [16, 8], strides = [1, 1]} : vector<16x32xf32> to vector<16x8xf32>
    %c0_15 = arith.constant 0 : index
    %c0_16 = arith.constant 0 : index
    %c0_17 = arith.constant 0 : index
    %16 = vector.load %arg8[%c0_15, %c0_16, %c0_17] : memref<4x16x8xf32, #tpu.memory_space<vmem>>, vector<1x16x8xf32>
    %17 = vector.shape_cast %16 : vector<1x16x8xf32> to vector<16x8xf32>
    %18 = vector.shape_cast %15 : vector<16x8xf32> to vector<1x16x8xf32>
    tpu.vector_store %arg8[%c0_15, %c0_16, %c0_17], %18 {strides = array<i32>} : memref<4x16x8xf32, #tpu.memory_space<vmem>>, vector<1x16x8xf32>,
    %19 = vector.extract_strided_slice %13 {offsets = [0, 0], sizes = [16, 8], strides = [1, 1]} : vector<16x32xf32> to vector<16x8xf32>
    %20 = vector.extract_strided_slice %14 {offsets = [0, 0], sizes = [128, 8], strides = [1, 1]} : vector<128x32xf32> to vector<128x8xf32>
    %cst_18 = arith.constant dense<0.000000e+00> : vector<16x128xf32>
    %21 = tpu.matmul %19, %20, %cst_18 {dimension_numbers = #tpu.dot_dimension_numbers<[1], [1], [0], [0], [0, 0, 1, 0], [], []>} : vector<16x8xf32>, vector<128x8xf32>, vector<16x128xf32> -> vector<16x128xf32>
    %c0_19 = arith.constant 0 : index
    %c0_20 = arith.constant 0 : index
    %c0_21 = arith.constant 0 : index
    %22 = vector.load %arg9[%c0_19, %c0_20, %c0_21] : memref<4x16x128xf32, #tpu.memory_space<vmem>>, vector<1x16x128xf32>
    %23 = vector.shape_cast %22 : vector<1x16x128xf32> to vector<16x128xf32>
    %24 = vector.shape_cast %21 : vector<16x128xf32> to vector<1x16x128xf32>
    tpu.vector_store %arg9[%c0_19, %c0_20, %c0_21], %24 {strides = array<i32>} : memref<4x16x128xf32, #tpu.memory_space<vmem>>, vector<1x16x128xf32>,
    %25 = vector.extract_strided_slice %8 {offsets = [0, 8], sizes = [16, 8], strides = [1, 1]} : vector<16x32xf32> to vector<16x8xf32>
    %c1 = arith.constant 1 : index
    %c0_22 = arith.constant 0 : index
    %c0_23 = arith.constant 0 : index
    %26 = vector.load %arg8[%c1, %c0_22, %c0_23] : memref<4x16x8xf32, #tpu.memory_space<vmem>>, vector<1x16x8xf32>
    %27 = vector.shape_cast %26 : vector<1x16x8xf32> to vector<16x8xf32>
    %28 = vector.shape_cast %25 : vector<16x8xf32> to vector<1x16x8xf32>
    tpu.vector_store %arg8[%c1, %c0_22, %c0_23], %28 {strides = array<i32>} : memref<4x16x8xf32, #tpu.memory_space<vmem>>, vector<1x16x8xf32>,
    %29 = vector.extract_strided_slice %13 {offsets = [0, 8], sizes = [16, 8], strides = [1, 1]} : vector<16x32xf32> to vector<16x8xf32>
    %30 = vector.extract_strided_slice %14 {offsets = [0, 8], sizes = [128, 8], strides = [1, 1]} : vector<128x32xf32> to vector<128x8xf32>
    %cst_24 = arith.constant dense<0.000000e+00> : vector<16x128xf32>
    %31 = tpu.matmul %29, %30, %cst_24 {dimension_numbers = #tpu.dot_dimension_numbers<[1], [1], [0], [0], [0, 0, 1, 0], [], []>} : vector<16x8xf32>, vector<128x8xf32>, vector<16x128xf32> -> vector<16x128xf32>
    %c1_25 = arith.constant 1 : index
    %c0_26 = arith.constant 0 : index
    %c0_27 = arith.constant 0 : index
    %32 = vector.load %arg9[%c1_25, %c0_26, %c0_27] : memref<4x16x128xf32, #tpu.memory_space<vmem>>, vector<1x16x128xf32>
    %33 = vector.shape_cast %32 : vector<1x16x128xf32> to vector<16x128xf32>
    %34 = vector.shape_cast %31 : vector<16x128xf32> to vector<1x16x128xf32>
    tpu.vector_store %arg9[%c1_25, %c0_26, %c0_27], %34 {strides = array<i32>} : memref<4x16x128xf32, #tpu.memory_space<vmem>>, vector<1x16x128xf32>,
    %35 = vector.extract_strided_slice %8 {offsets = [0, 16], sizes = [16, 8], strides = [1, 1]} : vector<16x32xf32> to vector<16x8xf32>
    %c2 = arith.constant 2 : index
    %c0_28 = arith.constant 0 : index
    %c0_29 = arith.constant 0 : index
    %36 = vector.load %arg8[%c2, %c0_28, %c0_29] : memref<4x16x8xf32, #tpu.memory_space<vmem>>, vector<1x16x8xf32>
    %37 = vector.shape_cast %36 : vector<1x16x8xf32> to vector<16x8xf32>
    %38 = vector.shape_cast %35 : vector<16x8xf32> to vector<1x16x8xf32>
    tpu.vector_store %arg8[%c2, %c0_28, %c0_29], %38 {strides = array<i32>} : memref<4x16x8xf32, #tpu.memory_space<vmem>>, vector<1x16x8xf32>,
    %39 = vector.extract_strided_slice %13 {offsets = [0, 16], sizes = [16, 8], strides = [1, 1]} : vector<16x32xf32> to vector<16x8xf32>
    %40 = vector.extract_strided_slice %14 {offsets = [0, 16], sizes = [128, 8], strides = [1, 1]} : vector<128x32xf32> to vector<128x8xf32>
    %cst_30 = arith.constant dense<0.000000e+00> : vector<16x128xf32>
    %41 = tpu.matmul %39, %40, %cst_30 {dimension_numbers = #tpu.dot_dimension_numbers<[1], [1], [0], [0], [0, 0, 1, 0], [], []>} : vector<16x8xf32>, vector<128x8xf32>, vector<16x128xf32> -> vector<16x128xf32>
    %c2_31 = arith.constant 2 : index
    %c0_32 = arith.constant 0 : index
    %c0_33 = arith.constant 0 : index
    %42 = vector.load %arg9[%c2_31, %c0_32, %c0_33] : memref<4x16x128xf32, #tpu.memory_space<vmem>>, vector<1x16x128xf32>
    %43 = vector.shape_cast %42 : vector<1x16x128xf32> to vector<16x128xf32>
    %44 = vector.shape_cast %41 : vector<16x128xf32> to vector<1x16x128xf32>
    tpu.vector_store %arg9[%c2_31, %c0_32, %c0_33], %44 {strides = array<i32>} : memref<4x16x128xf32, #tpu.memory_space<vmem>>, vector<1x16x128xf32>,
    %45 = vector.extract_strided_slice %8 {offsets = [0, 24], sizes = [16, 8], strides = [1, 1]} : vector<16x32xf32> to vector<16x8xf32>
    %c3 = arith.constant 3 : index
    %c0_34 = arith.constant 0 : index
    %c0_35 = arith.constant 0 : index
    %46 = vector.load %arg8[%c3, %c0_34, %c0_35] : memref<4x16x8xf32, #tpu.memory_space<vmem>>, vector<1x16x8xf32>
    %47 = vector.shape_cast %46 : vector<1x16x8xf32> to vector<16x8xf32>
    %48 = vector.shape_cast %45 : vector<16x8xf32> to vector<1x16x8xf32>
    tpu.vector_store %arg8[%c3, %c0_34, %c0_35], %48 {strides = array<i32>} : memref<4x16x8xf32, #tpu.memory_space<vmem>>, vector<1x16x8xf32>,
    %49 = vector.extract_strided_slice %13 {offsets = [0, 24], sizes = [16, 8], strides = [1, 1]} : vector<16x32xf32> to vector<16x8xf32>
    %50 = vector.extract_strided_slice %14 {offsets = [0, 24], sizes = [128, 8], strides = [1, 1]} : vector<128x32xf32> to vector<128x8xf32>
    %cst_36 = arith.constant dense<0.000000e+00> : vector<16x128xf32>
    %51 = tpu.matmul %49, %50, %cst_36 {dimension_numbers = #tpu.dot_dimension_numbers<[1], [1], [0], [0], [0, 0, 1, 0], [], []>} : vector<16x8xf32>, vector<128x8xf32>, vector<16x128xf32> -> vector<16x128xf32>
    %c3_37 = arith.constant 3 : index
    %c0_38 = arith.constant 0 : index
    %c0_39 = arith.constant 0 : index
    %52 = vector.load %arg9[%c3_37, %c0_38, %c0_39] : memref<4x16x128xf32, #tpu.memory_space<vmem>>, vector<1x16x128xf32>
    %53 = vector.shape_cast %52 : vector<1x16x128xf32> to vector<16x128xf32>
    %54 = vector.shape_cast %51 : vector<16x128xf32> to vector<1x16x128xf32>
    tpu.vector_store %arg9[%c3_37, %c0_38, %c0_39], %54 {strides = array<i32>} : memref<4x16x128xf32, #tpu.memory_space<vmem>>, vector<1x16x128xf32>,
    return
  }
  func.func @transform_0(%arg0: i32) -> (i32, i32) {
    %c0_i32 = arith.constant 0 : i32
    %c0_i32_0 = arith.constant 0 : i32
    %c0_i32_1 = arith.constant 0 : i32
    return %c0_i32, %c0_i32_0 : i32, i32
  }
  func.func @transform_1(%arg0: i32) -> (i32, i32) {
    %c0_i32 = arith.constant 0 : i32
    %c0_i32_0 = arith.constant 0 : i32
    %c0_i32_1 = arith.constant 0 : i32
    return %c0_i32, %c0_i32_0 : i32, i32
  }
  func.func @transform_2(%arg0: i32) -> (i32, i32) {
    %c0_i32 = arith.constant 0 : i32
    %c0_i32_0 = arith.constant 0 : i32
    %c0_i32_1 = arith.constant 0 : i32
    return %c0_i32, %c0_i32_0 : i32, i32
  }
  func.func @transform_3(%arg0: i32) -> (i32, i32) {
    %c0_i32 = arith.constant 0 : i32
    %c0_i32_0 = arith.constant 0 : i32
    %c0_i32_1 = arith.constant 0 : i32
    return %c0_i32, %c0_i32_0 : i32, i32
  }
  func.func @transform_4(%arg0: i32) -> (i32, i32) {
    %c0_i32 = arith.constant 0 : i32
    %c0_i32_0 = arith.constant 0 : i32
    %c0_i32_1 = arith.constant 0 : i32
    return %c0_i32, %c0_i32_0 : i32, i32
  }
  func.func @transform_5(%arg0: i32) -> (i32, i32) {
    %c0_i32 = arith.constant 0 : i32
    %c0_i32_0 = arith.constant 0 : i32
    %c0_i32_1 = arith.constant 0 : i32
    return %c0_i32, %c0_i32_0 : i32, i32
  }
  func.func @transform_6(%arg0: i32) -> (i32, i32) {
    %c0_i32 = arith.constant 0 : i32
    %c0_i32_0 = arith.constant 0 : i32
    %c0_i32_1 = arith.constant 0 : i32
    return %c0_i32, %c0_i32_0 : i32, i32
  }
  func.func @transform_7(%arg0: i32) -> (i32, i32, i32) {
    %c0_i32 = arith.constant 0 : i32
    %c0_i32_0 = arith.constant 0 : i32
    %c0_i32_1 = arith.constant 0 : i32
    %c0_i32_2 = arith.constant 0 : i32
    return %c0_i32, %c0_i32_0, %c0_i32_1 : i32, i32, i32
  }
  func.func @transform_8(%arg0: i32) -> (i32, i32, i32) {
    %c0_i32 = arith.constant 0 : i32
    %c0_i32_0 = arith.constant 0 : i32
    %c0_i32_1 = arith.constant 0 : i32
    %c0_i32_2 = arith.constant 0 : i32
    return %c0_i32, %c0_i32_0, %c0_i32_1 : i32, i32, i32
  }
}

</mosaic_0001>

<llo_original>
// kernel: tpu_custom_call.1
$region0: #{tpu_custom_call.1}
  #allocation0 [shape = 'u32[]', space=smem, size = 0x4, offset = 0x4, fixed_abs, tag = 'smem constant byte address 0x4 - core index']
  #allocation1 [shape = 'u32[72,128]{1,0:T(1,128)}', space=vmem, size = 0x9000, scoped, tag = 'internal scratch']
  %s0 = inlined_call_operand.vmem [shape: f32[16,64], index: 0, kind: input, shape index: {}]
  %s1 = inlined_call_operand.vmem [shape: f32[16,64], index: 1, kind: input, shape index: {}]
  %s2 = inlined_call_operand.vmem [shape: f32[32,64], index: 2, kind: input, shape index: {}]
  %s3 = inlined_call_operand.vmem [shape: f32[1,32], index: 3, kind: input, shape index: {}]
  %s4 = inlined_call_operand.vmem [shape: f32[32,64], index: 4, kind: input, shape index: {}]
  %s5 = inlined_call_operand.vmem [shape: f32[1,32], index: 5, kind: input, shape index: {}]
  %s6 = inlined_call_operand.vmem [shape: f32[128,32], index: 6, kind: input, shape index: {}]
  %s7 = inlined_call_operand.vmem [shape: f32[4,16,8], index: 7, kind: output, shape index: {0}]
  %s8 = inlined_call_operand.hbm [shape: f32[4,16,128], index: 8, kind: output, shape index: {1}]
  %9 = xla_tuple %s7, %s8
  %s10 = sld [smem:[#allocation0]]
  $region46: #{tpu_custom_call.1} parent=0
    _
  %s12 = ssub.s32 1, %s10
  %s13 = scalar_select 0, %s12, %s10
  $region1: #{tpu_custom_call.1} parent=0
    #allocation2 [shape = 'u8[32768]{0}', space=vmem, size = 0x8000, scoped, tag = 'output window, operand 1, single buffered']
    #allocation3 [shape = 's32[1]{0}', space=sflag, size = 0x4, scoped, tag = 'scoped memory for tpu_custom_call.1']
    %14 = vsyncpa [#allocation3], 0
    // Predicated region
    $region2: #{tpu_custom_call.1} parent=1 // pred_check
      _
    $region3: #{tpu_custom_call.1} parent=1 // pred_check_branch
      %16 = sbr.rel (0) target = $region5
    $region4: #{tpu_custom_call.1} parent=1 // pred_region
      _
    $region5: #{tpu_custom_call.1} parent=1 // pred_fallthru
      _
    // Predicated region
    $region6: #{tpu_custom_call.1} parent=1 // pred_check
      _
    $region7: #{tpu_custom_call.1} parent=1 // pred_check_branch
      %18 = sbr.rel (0) target = $region9
    $region8: #{tpu_custom_call.1} parent=1 // pred_region
      _
    $region9: #{tpu_custom_call.1} parent=1 // pred_fallthru
      _
    // Predicated region
    $region10: #{tpu_custom_call.1} parent=1 // pred_check
      _
    $region11: #{tpu_custom_call.1} parent=1 // pred_check_branch
      %20 = sbr.rel (0) target = $region13
    $region12: #{tpu_custom_call.1} parent=1 // pred_region
      _
    $region13: #{tpu_custom_call.1} parent=1 // pred_fallthru
      _
    // Predicated region
    $region14: #{tpu_custom_call.1} parent=1 // pred_check
      _
    $region15: #{tpu_custom_call.1} parent=1 // pred_check_branch
      %22 = sbr.rel (0) target = $region17
    $region16: #{tpu_custom_call.1} parent=1 // pred_region
      _
    $region17: #{tpu_custom_call.1} parent=1 // pred_fallthru
      _
    // Predicated region
    $region18: #{tpu_custom_call.1} parent=1 // pred_check
      _
    $region19: #{tpu_custom_call.1} parent=1 // pred_check_branch
      %24 = sbr.rel (0) target = $region21
    $region20: #{tpu_custom_call.1} parent=1 // pred_region
      _
    $region21: #{tpu_custom_call.1} parent=1 // pred_fallthru
      _
    // Predicated region
    $region22: #{tpu_custom_call.1} parent=1 // pred_check
      _
    $region23: #{tpu_custom_call.1} parent=1 // pred_check_branch
      %26 = sbr.rel (0) target = $region25
    $region24: #{tpu_custom_call.1} parent=1 // pred_region
      _
    $region25: #{tpu_custom_call.1} parent=1 // pred_fallthru
      _
    // Predicated region
    $region26: #{tpu_custom_call.1} parent=1 // pred_check
      _
    $region27: #{tpu_custom_call.1} parent=1 // pred_check_branch
      %28 = sbr.rel (0) target = $region29
    $region28: #{tpu_custom_call.1} parent=1 // pred_region
      _
    $region29: #{tpu_custom_call.1} parent=1 // pred_fallthru
      _
    %v29 = vld [vmem:[%s0] sm:$0xff]
    %v30 = vld [vmem:[%s0 + $0x8] sm:$0xff]
    %v31 = vld [vmem:[%s1] sm:$0xff]
    %v32 = vld [vmem:[%s1 + $0x8] sm:$0xff]
    %v33 = vld [vmem:[%s2] sm:$0xff]
    %v34 = vld [vmem:[%s2 + $0x8] sm:$0xff]
    %v35 = vld [vmem:[%s2 + $0x10] sm:$0xff]
    %v36 = vld [vmem:[%s2 + $0x18] sm:$0xff]
    %v37 = vld [vmem:[%s3] sm:$0x1]
    %v39 = vperm.slane %v37, 0
    %vm41 = vcmask 523264
    %v43 = vsel %vm41, %v29, 0
    %v46 = vsel %vm41, %v30, 0
    %v49 = vsel %vm41, %v33, 0
    %v52 = vsel %vm41, %v34, 0
    %v55 = vsel %vm41, %v35, 0
    %v58 = vsel %vm41, %v36, 0
    %60 = vmatpush.xpose.msra.mxu0 0.0
    %61 = vmatpush.xpose.msra.mxu0 0.0
    %62 = vmatpush.xpose.msra.mxu0 0.0
    %63 = vmatpush.xpose.msra.mxu0 0.0
    %64 = vmatpush.xpose.msra.mxu0 0.0
    %65 = vmatpush.xpose.msra.mxu0 0.0
    %66 = vmatpush.xpose.msra.mxu0 0.0
    %67 = vmatpush.xpose.msra.mxu0 0.0
    %68 = vmatpush.xpose.msra.mxu0 0.0
    %69 = vmatpush.xpose.msra.mxu0 0.0
    %70 = vmatpush.xpose.msra.mxu0 0.0
    %71 = vmatpush.xpose.msra.mxu0 0.0
    %72 = vmatpush.xpose.msra.mxu0 %v58
    %73 = vmatpush.xpose.msra.mxu0 %v55
    %74 = vmatpush.xpose.msra.mxu0 %v52
    %75 = vmatpush.xpose.msra.mxu0 %v49
    %76 = vmatmul.f32.gmra.mxu0 %v43
    %v77 = vpop.f32.mrf.mxu0
    %v78 = vadd.f32 %v39, %v77
    %79 = vmatmul.f32.gmra.mxu0 %v46
    %v80 = vpop.f32.mrf.mxu0
    %v81 = vadd.f32 %v39, %v80
    %82 = vdwg.mxu0
    %v83 = vmul.f32 %v78, 0.35355338
    %v84 = vmul.f32 %v81, 0.35355338
    %v85 = vld [vmem:[%s4] sm:$0xff]
    %v86 = vld [vmem:[%s4 + $0x8] sm:$0xff]
    %v87 = vld [vmem:[%s4 + $0x10] sm:$0xff]
    %v88 = vld [vmem:[%s4 + $0x18] sm:$0xff]
    %v89 = vld [vmem:[%s5] sm:$0x1]
    %v91 = vperm.slane %v89, 0
    %v94 = vsel %vm41, %v31, 0
    %v97 = vsel %vm41, %v32, 0
    %v100 = vsel %vm41, %v85, 0
    %v103 = vsel %vm41, %v86, 0
    %v106 = vsel %vm41, %v87, 0
    %v109 = vsel %vm41, %v88, 0
    %111 = vmatpush.xpose.msra.mxu0 0.0
    %112 = vmatpush.xpose.msra.mxu0 0.0
    %113 = vmatpush.xpose.msra.mxu0 0.0
    %114 = vmatpush.xpose.msra.mxu0 0.0
    %115 = vmatpush.xpose.msra.mxu0 0.0
    %116 = vmatpush.xpose.msra.mxu0 0.0
    %117 = vmatpush.xpose.msra.mxu0 0.0
    %118 = vmatpush.xpose.msra.mxu0 0.0
    %119 = vmatpush.xpose.msra.mxu0 0.0
    %120 = vmatpush.xpose.msra.mxu0 0.0
    %121 = vmatpush.xpose.msra.mxu0 0.0
    %122 = vmatpush.xpose.msra.mxu0 0.0
    %123 = vmatpush.xpose.msra.mxu0 %v109
    %124 = vmatpush.xpose.msra.mxu0 %v106
    %125 = vmatpush.xpose.msra.mxu0 %v103
    %126 = vmatpush.xpose.msra.mxu0 %v100
    %127 = vmatmul.f32.gmra.mxu0 %v94
    %v128 = vpop.f32.mrf.mxu0
    %v129 = vadd.f32 %v91, %v128
    %130 = vmatmul.f32.gmra.mxu0 %v97
    %v131 = vpop.f32.mrf.mxu0
    %v132 = vadd.f32 %v91, %v131
    %133 = vdwg.mxu0
    %v134 = vld [vmem:[%s6] sm:$0xff]
    %v135 = vld [vmem:[%s6 + $0x8] sm:$0xff]
    %v136 = vld [vmem:[%s6 + $0x10] sm:$0xff]
    %v137 = vld [vmem:[%s6 + $0x18] sm:$0xff]
    %v138 = vld [vmem:[%s6 + $0x20] sm:$0xff]
    %v139 = vld [vmem:[%s6 + $0x28] sm:$0xff]
    %v140 = vld [vmem:[%s6 + $0x30] sm:$0xff]
    %v141 = vld [vmem:[%s6 + $0x38] sm:$0xff]
    %v142 = vld [vmem:[%s6 + $0x40] sm:$0xff]
    %v143 = vld [vmem:[%s6 + $0x48] sm:$0xff]
    %v144 = vld [vmem:[%s6 + $0x50] sm:$0xff]
    %v145 = vld [vmem:[%s6 + $0x58] sm:$0xff]
    %v146 = vld [vmem:[%s6 + $0x60] sm:$0xff]
    %v147 = vld [vmem:[%s6 + $0x68] sm:$0xff]
    %v148 = vld [vmem:[%s6 + $0x70] sm:$0xff]
    %v149 = vld [vmem:[%s6 + $0x78] sm:$0xff]
    %vm150 = vcmask 64512
    %151 = vst.msk [vmem:[%s7] sm:$0xff] %vm150, %v83
    %152 = vst.msk [vmem:[%s7 + $0x8] sm:$0xff] %vm150, %v84
    %v154 = vsel %vm150, %v129, 0
    %v157 = vsel %vm150, %v132, 0
    %v160 = vsel %vm150, %v134, 0
    %v163 = vsel %vm150, %v135, 0
    %v166 = vsel %vm150, %v136, 0
    %v169 = vsel %vm150, %v137, 0
    %v172 = vsel %vm150, %v138, 0
    %v175 = vsel %vm150, %v139, 0
    %v178 = vsel %vm150, %v140, 0
    %v181 = vsel %vm150, %v141, 0
    %v184 = vsel %vm150, %v142, 0
    %v187 = vsel %vm150, %v143, 0
    %v190 = vsel %vm150, %v144, 0
    %v193 = vsel %vm150, %v145, 0
    %v196 = vsel %vm150, %v146, 0
    %v199 = vsel %vm150, %v147, 0
    %v202 = vsel %vm150, %v148, 0
    %v205 = vsel %vm150, %v149, 0
    %207 = vmatpush.xpose.msra.mxu0 %v205
    %208 = vmatpush.xpose.msra.mxu0 %v202
    %209 = vmatpush.xpose.msra.mxu0 %v199
    %210 = vmatpush.xpose.msra.mxu0 %v196
    %211 = vmatpush.xpose.msra.mxu0 %v193
    %212 = vmatpush.xpose.msra.mxu0 %v190
    %213 = vmatpush.xpose.msra.mxu0 %v187
    %214 = vmatpush.xpose.msra.mxu0 %v184
    %215 = vmatpush.xpose.msra.mxu0 %v181
    %216 = vmatpush.xpose.msra.mxu0 %v178
    %217 = vmatpush.xpose.msra.mxu0 %v175
    %218 = vmatpush.xpose.msra.mxu0 %v172
    %219 = vmatpush.xpose.msra.mxu0 %v169
    %220 = vmatpush.xpose.msra.mxu0 %v166
    %221 = vmatpush.xpose.msra.mxu0 %v163
    %222 = vmatpush.xpose.msra.mxu0 %v160
    %223 = vmatmul.f32.gmra.mxu0 %v154
    %v224 = vpop.f32.mrf.mxu0
    %v225 = vadd.f32 0.0, %v224
    %226 = vmatmul.f32.gmra.mxu0 %v157
    %v227 = vpop.f32.mrf.mxu0
    %v228 = vadd.f32 0.0, %v227
    %229 = vdwg.mxu0
    %230 = vst [vmem:[#allocation2] sm:$0xff] %v225
    %231 = vst [vmem:[#allocation2 + $0x8] sm:$0xff] %v228
    %234 = vrot.lane.b32.xlu0 %v83, 120
    %v235 = vpop.permute.xlu0 %234
    %236 = vrot.lane.b32.xlu0 %v84, 120
    %v237 = vpop.permute.xlu0 %236
    %s240 = scalar_lea.vmem %s7, 16
    %241 = vst.msk [vmem:[%s240] sm:$0xff] %vm150, %v235
    %242 = vst.msk [vmem:[%s240 + $0x8] sm:$0xff] %vm150, %v237
    %243 = vrot.lane.b32.xlu0 %v129, 120
    %v244 = vpop.permute.xlu0 %243
    %245 = vrot.lane.b32.xlu0 %v132, 120
    %v246 = vpop.permute.xlu0 %245
    %247 = vrot.lane.b32.xlu0 %v134, 120
    %v248 = vpop.permute.xlu0 %247
    %249 = vrot.lane.b32.xlu0 %v135, 120
    %v250 = vpop.permute.xlu0 %249
    %251 = vrot.lane.b32.xlu0 %v136, 120
    %v252 = vpop.permute.xlu0 %251
    %253 = vrot.lane.b32.xlu0 %v137, 120
    %v254 = vpop.permute.xlu0 %253
    %255 = vrot.lane.b32.xlu0 %v138, 120
    %v256 = vpop.permute.xlu0 %255
    %257 = vrot.lane.b32.xlu0 %v139, 120
    %v258 = vpop.permute.xlu0 %257
    %259 = vrot.lane.b32.xlu0 %v140, 120
    %v260 = vpop.permute.xlu0 %259
    %261 = vrot.lane.b32.xlu0 %v141, 120
    %v262 = vpop.permute.xlu0 %261
    %263 = vrot.lane.b32.xlu0 %v142, 120
    %v264 = vpop.permute.xlu0 %263
    %265 = vrot.lane.b32.xlu0 %v143, 120
    %v266 = vpop.permute.xlu0 %265
    %267 = vrot.lane.b32.xlu0 %v144, 120
    %v268 = vpop.permute.xlu0 %267
    %269 = vrot.lane.b32.xlu0 %v145, 120
    %v270 = vpop.permute.xlu0 %269
    %271 = vrot.lane.b32.xlu0 %v146, 120
    %v272 = vpop.permute.xlu0 %271
    %273 = vrot.lane.b32.xlu0 %v147, 120
    %v274 = vpop.permute.xlu0 %273
    %275 = vrot.lane.b32.xlu0 %v148, 120
    %v276 = vpop.permute.xlu0 %275
    %277 = vrot.lane.b32.xlu0 %v149, 120
    %v278 = vpop.permute.xlu0 %277
    %v279 = vsel %vm150, %v244, 0
    %v281 = vsel %vm150, %v246, 0
    %v283 = vsel %vm150, %v248, 0
    %v285 = vsel %vm150, %v250, 0
    %v287 = vsel %vm150, %v252, 0
    %v289 = vsel %vm150, %v254, 0
    %v291 = vsel %vm150, %v256, 0
    %v293 = vsel %vm150, %v258, 0
    %v295 = vsel %vm150, %v260, 0
    %v297 = vsel %vm150, %v262, 0
    %v299 = vsel %vm150, %v264, 0
    %v301 = vsel %vm150, %v266, 0
    %v303 = vsel %vm150, %v268, 0
    %v305 = vsel %vm150, %v270, 0
    %v307 = vsel %vm150, %v272, 0
    %v309 = vsel %vm150, %v274, 0
    %v311 = vsel %vm150, %v276, 0
    %v313 = vsel %vm150, %v278, 0
    %315 = vmatpush.xpose.msra.mxu0 %v313
    %316 = vmatpush.xpose.msra.mxu0 %v311
    %317 = vmatpush.xpose.msra.mxu0 %v309
    %318 = vmatpush.xpose.msra.mxu0 %v307
    %319 = vmatpush.xpose.msra.mxu0 %v305
    %320 = vmatpush.xpose.msra.mxu0 %v303
    %321 = vmatpush.xpose.msra.mxu0 %v301
    %322 = vmatpush.xpose.msra.mxu0 %v299
    %323 = vmatpush.xpose.msra.mxu0 %v297
    %324 = vmatpush.xpose.msra.mxu0 %v295
    %325 = vmatpush.xpose.msra.mxu0 %v293
    %326 = vmatpush.xpose.msra.mxu0 %v291
    %327 = vmatpush.xpose.msra.mxu0 %v289
    %328 = vmatpush.xpose.msra.mxu0 %v287
    %329 = vmatpush.xpose.msra.mxu0 %v285
    %330 = vmatpush.xpose.msra.mxu0 %v283
    %331 = vmatmul.f32.gmra.mxu0 %v279
    %v332 = vpop.f32.mrf.mxu0
    %v333 = vadd.f32 0.0, %v332
    %334 = vmatmul.f32.gmra.mxu0 %v281
    %v335 = vpop.f32.mrf.mxu0
    %v336 = vadd.f32 0.0, %v335
    %337 = vdwg.mxu0
    %s338 = scalar_lea.vmem [#allocation2], 16
    %339 = vst [vmem:[%s338] sm:$0xff] %v333
    %340 = vst [vmem:[%s338 + $0x8] sm:$0xff] %v336
    %341 = vrot.lane.b32.xlu0 %v83, 112
    %v342 = vpop.permute.xlu0 %341
    %343 = vrot.lane.b32.xlu0 %v84, 112
    %v344 = vpop.permute.xlu0 %343
    %s347 = scalar_lea.vmem %s7, 32
    %348 = vst.msk [vmem:[%s347] sm:$0xff] %vm150, %v342
    %349 = vst.msk [vmem:[%s347 + $0x8] sm:$0xff] %vm150, %v344
    %350 = vrot.lane.b32.xlu0 %v129, 112
    %v351 = vpop.permute.xlu0 %350
    %352 = vrot.lane.b32.xlu0 %v132, 112
    %v353 = vpop.permute.xlu0 %352
    %354 = vrot.lane.b32.xlu0 %v134, 112
    %v355 = vpop.permute.xlu0 %354
    %356 = vrot.lane.b32.xlu0 %v135, 112
    %v357 = vpop.permute.xlu0 %356
    %358 = vrot.lane.b32.xlu0 %v136, 112
    %v359 = vpop.permute.xlu0 %358
    %360 = vrot.lane.b32.xlu0 %v137, 112
    %v361 = vpop.permute.xlu0 %360
    %362 = vrot.lane.b32.xlu0 %v138, 112
    %v363 = vpop.permute.xlu0 %362
    %364 = vrot.lane.b32.xlu0 %v139, 112
    %v365 = vpop.permute.xlu0 %364
    %366 = vrot.lane.b32.xlu0 %v140, 112
    %v367 = vpop.permute.xlu0 %366
    %368 = vrot.lane.b32.xlu0 %v141, 112
    %v369 = vpop.permute.xlu0 %368
    %370 = vrot.lane.b32.xlu0 %v142, 112
    %v371 = vpop.permute.xlu0 %370
    %372 = vrot.lane.b32.xlu0 %v143, 112
    %v373 = vpop.permute.xlu0 %372
    %374 = vrot.lane.b32.xlu0 %v144, 112
    %v375 = vpop.permute.xlu0 %374
    %376 = vrot.lane.b32.xlu0 %v145, 112
    %v377 = vpop.permute.xlu0 %376
    %378 = vrot.lane.b32.xlu0 %v146, 112
    %v379 = vpop.permute.xlu0 %378
    %380 = vrot.lane.b32.xlu0 %v147, 112
    %v381 = vpop.permute.xlu0 %380
    %382 = vrot.lane.b32.xlu0 %v148, 112
    %v383 = vpop.permute.xlu0 %382
    %384 = vrot.lane.b32.xlu0 %v149, 112
    %v385 = vpop.permute.xlu0 %384
    %v386 = vsel %vm150, %v351, 0
    %v388 = vsel %vm150, %v353, 0
    %v390 = vsel %vm150, %v355, 0
    %v392 = vsel %vm150, %v357, 0
    %v394 = vsel %vm150, %v359, 0
    %v396 = vsel %vm150, %v361, 0
    %v398 = vsel %vm150, %v363, 0
    %v400 = vsel %vm150, %v365, 0
    %v402 = vsel %vm150, %v367, 0
    %v404 = vsel %vm150, %v369, 0
    %v406 = vsel %vm150, %v371, 0
    %v408 = vsel %vm150, %v373, 0
    %v410 = vsel %vm150, %v375, 0
    %v412 = vsel %vm150, %v377, 0
    %v414 = vsel %vm150, %v379, 0
    %v416 = vsel %vm150, %v381, 0
    %v418 = vsel %vm150, %v383, 0
    %v420 = vsel %vm150, %v385, 0
    %422 = vmatpush.xpose.msra.mxu0 %v420
    %423 = vmatpush.xpose.msra.mxu0 %v418
    %424 = vmatpush.xpose.msra.mxu0 %v416
    %425 = vmatpush.xpose.msra.mxu0 %v414
    %426 = vmatpush.xpose.msra.mxu0 %v412
    %427 = vmatpush.xpose.msra.mxu0 %v410
    %428 = vmatpush.xpose.msra.mxu0 %v408
    %429 = vmatpush.xpose.msra.mxu0 %v406
    %430 = vmatpush.xpose.msra.mxu0 %v404
    %431 = vmatpush.xpose.msra.mxu0 %v402
    %432 = vmatpush.xpose.msra.mxu0 %v400
    %433 = vmatpush.xpose.msra.mxu0 %v398
    %434 = vmatpush.xpose.msra.mxu0 %v396
    %435 = vmatpush.xpose.msra.mxu0 %v394
    %436 = vmatpush.xpose.msra.mxu0 %v392
    %437 = vmatpush.xpose.msra.mxu0 %v390
    %438 = vmatmul.f32.gmra.mxu0 %v386
    %v439 = vpop.f32.mrf.mxu0
    %v440 = vadd.f32 0.0, %v439
    %441 = vmatmul.f32.gmra.mxu0 %v388
    %v442 = vpop.f32.mrf.mxu0
    %v443 = vadd.f32 0.0, %v442
    %444 = vdwg.mxu0
    %s445 = scalar_lea.vmem [#allocation2], 32
    %446 = vst [vmem:[%s445] sm:$0xff] %v440
    %447 = vst [vmem:[%s445 + $0x8] sm:$0xff] %v443
    %448 = vrot.lane.b32.xlu0 %v83, 104
    %v449 = vpop.permute.xlu0 %448
    %450 = vrot.lane.b32.xlu0 %v84, 104
    %v451 = vpop.permute.xlu0 %450
    %s454 = scalar_lea.vmem %s7, 48
    %455 = vst.msk [vmem:[%s454] sm:$0xff] %vm150, %v449
    %456 = vst.msk [vmem:[%s454 + $0x8] sm:$0xff] %vm150, %v451
    %457 = vrot.lane.b32.xlu0 %v129, 104
    %v458 = vpop.permute.xlu0 %457
    %459 = vrot.lane.b32.xlu0 %v132, 104
    %v460 = vpop.permute.xlu0 %459
    %461 = vrot.lane.b32.xlu0 %v134, 104
    %v462 = vpop.permute.xlu0 %461
    %463 = vrot.lane.b32.xlu0 %v135, 104
    %v464 = vpop.permute.xlu0 %463
    %465 = vrot.lane.b32.xlu0 %v136, 104
    %v466 = vpop.permute.xlu0 %465
    %467 = vrot.lane.b32.xlu0 %v137, 104
    %v468 = vpop.permute.xlu0 %467
    %469 = vrot.lane.b32.xlu0 %v138, 104
    %v470 = vpop.permute.xlu0 %469
    %471 = vrot.lane.b32.xlu0 %v139, 104
    %v472 = vpop.permute.xlu0 %471
    %473 = vrot.lane.b32.xlu0 %v140, 104
    %v474 = vpop.permute.xlu0 %473
    %475 = vrot.lane.b32.xlu0 %v141, 104
    %v476 = vpop.permute.xlu0 %475
    %477 = vrot.lane.b32.xlu0 %v142, 104
    %v478 = vpop.permute.xlu0 %477
    %479 = vrot.lane.b32.xlu0 %v143, 104
    %v480 = vpop.permute.xlu0 %479
    %481 = vrot.lane.b32.xlu0 %v144, 104
    %v482 = vpop.permute.xlu0 %481
    %483 = vrot.lane.b32.xlu0 %v145, 104
    %v484 = vpop.permute.xlu0 %483
    %485 = vrot.lane.b32.xlu0 %v146, 104
    %v486 = vpop.permute.xlu0 %485
    %487 = vrot.lane.b32.xlu0 %v147, 104
    %v488 = vpop.permute.xlu0 %487
    %489 = vrot.lane.b32.xlu0 %v148, 104
    %v490 = vpop.permute.xlu0 %489
    %491 = vrot.lane.b32.xlu0 %v149, 104
    %v492 = vpop.permute.xlu0 %491
    %v493 = vsel %vm150, %v458, 0
    %v495 = vsel %vm150, %v460, 0
    %v497 = vsel %vm150, %v462, 0
    %v499 = vsel %vm150, %v464, 0
    %v501 = vsel %vm150, %v466, 0
    %v503 = vsel %vm150, %v468, 0
    %v505 = vsel %vm150, %v470, 0
    %v507 = vsel %vm150, %v472, 0
    %v509 = vsel %vm150, %v474, 0
    %v511 = vsel %vm150, %v476, 0
    %v513 = vsel %vm150, %v478, 0
    %v515 = vsel %vm150, %v480, 0
    %v517 = vsel %vm150, %v482, 0
    %v519 = vsel %vm150, %v484, 0
    %v521 = vsel %vm150, %v486, 0
    %v523 = vsel %vm150, %v488, 0
    %v525 = vsel %vm150, %v490, 0
    %v527 = vsel %vm150, %v492, 0
    %529 = vmatpush.xpose.msra.mxu0 %v527
    %530 = vmatpush.xpose.msra.mxu0 %v525
    %531 = vmatpush.xpose.msra.mxu0 %v523
    %532 = vmatpush.xpose.msra.mxu0 %v521
    %533 = vmatpush.xpose.msra.mxu0 %v519
    %534 = vmatpush.xpose.msra.mxu0 %v517
    %535 = vmatpush.xpose.msra.mxu0 %v515
    %536 = vmatpush.xpose.msra.mxu0 %v513
    %537 = vmatpush.xpose.msra.mxu0 %v511
    %538 = vmatpush.xpose.msra.mxu0 %v509
    %539 = vmatpush.xpose.msra.mxu0 %v507
    %540 = vmatpush.xpose.msra.mxu0 %v505
    %541 = vmatpush.xpose.msra.mxu0 %v503
    %542 = vmatpush.xpose.msra.mxu0 %v501
    %543 = vmatpush.xpose.msra.mxu0 %v499
    %544 = vmatpush.xpose.msra.mxu0 %v497
    %545 = vmatmul.f32.gmra.mxu0 %v493
    %v546 = vpop.f32.mrf.mxu0
    %v547 = vadd.f32 0.0, %v546
    %548 = vmatmul.f32.gmra.mxu0 %v495
    %v549 = vpop.f32.mrf.mxu0
    %v550 = vadd.f32 0.0, %v549
    %551 = vdwg.mxu0
    %s552 = scalar_lea.vmem [#allocation2], 48
    %553 = vst [vmem:[%s552] sm:$0xff] %v547
    %554 = vst [vmem:[%s552 + $0x8] sm:$0xff] %v550
    // Predicated region
    $region30: #{tpu_custom_call.1} parent=1 // pred_check
      _
    $region31: #{tpu_custom_call.1} parent=1 // pred_check_branch
      %556 = sbr.rel (0) target = $region33
    $region32: #{tpu_custom_call.1} parent=1 // pred_region
      _
    $region33: #{tpu_custom_call.1} parent=1 // pred_fallthru
      _
    // Predicated region
    $region34: #{tpu_custom_call.1} parent=1 // pred_check
      _
    $region35: #{tpu_custom_call.1} parent=1 // pred_check_branch
      %558 = sbr.rel (0) target = $region37
    $region36: #{tpu_custom_call.1} parent=1 // pred_region
      %560 = vsyncadd [#allocation3], 0
      %s561 = sshll.u32 [#allocation2], 4
      %s562 = int_to_ptr.vmem [resolvable:$true] %s561
      %s563 = sshll.u32 %s8, 4
      %s564 = int_to_ptr.hbm [resolvable:$true] %s563
      %569 = dma.vmem_to_hbm [thread:$0]  %s562, 1024, %s564, [#allocation3], 128, 128, 8
    $region37: #{tpu_custom_call.1} parent=1 // pred_fallthru
      _
    // Predicated region
    $region38: #{tpu_custom_call.1} parent=1 // pred_check
      _
    $region39: #{tpu_custom_call.1} parent=1 // pred_check_branch
      %571 = sbr.rel (0) target = $region41
    $region40: #{tpu_custom_call.1} parent=1 // pred_region
      _
    $region41: #{tpu_custom_call.1} parent=1 // pred_fallthru
      _
    // Predicated region
    $region42: #{tpu_custom_call.1} parent=1 // pred_check
      _
    $region43: #{tpu_custom_call.1} parent=1 // pred_check_branch
      %573 = sbr.rel (0) target = $region45
    $region44: #{tpu_custom_call.1} parent=1 // pred_region
      %575 = dma.done [#allocation3], 1024
    $region45: #{tpu_custom_call.1} parent=1 // pred_fallthru
      _
    %576 = vsyncpa [#allocation3], 1

</llo_original>
